<compile_context>
chip_gen: v5e
topology: v5e:2x2
jax: 0.10.0
libtpu: 0.0.40
codegen_flags: <defaults>
</compile_context>

<pallas_src>
import functools

import jax
import jax.numpy as jnp
from jax import lax
from jax.experimental import pallas as pl
from jax.experimental.pallas import tpu as pltpu

EPS = 1e-12  # F.normalize default eps


def _vmem_caps():
    """Generation-aware scoped-VMEM request + block-picker budget.

    v5e/v6e: 128 MiB physical -> request 96 MiB; v7x: 64 MiB -> request 48 MiB.
    The tile picker may only spend half of the request so double-buffer skew,
    compiler temporaries and Mosaic internal scratch have headroom."""
    phys = 64 << 20                               # conservative default (v7x)
    try:
        phys = int(pltpu.get_tpu_info().vmem_capacity_bytes)
    except Exception:
        pass
    limit = min(phys * 3 // 4, 112 << 20)
    return limit, limit // 2


def _pick_block_n(C, N, K, x_itemsize, mxu_itemsize, budget_bytes, max_block_n=None):
    """Largest N (lane) tile whose *total* per-step VMEM footprint fits the
    budget — counts the double-buffered x DMA block, the f32 working copies,
    the (K, Nt) softmax temporaries and the Nt-independent blocks, not just the
    raw x block (v2 review fix)."""
    ks = max(K, 8)                                # sublane-padded cluster rows
    fixed = (2 * 2 * K * C * 4                    # w + centroids, double-buffered
             + 2 * K * C * 4                      # output block, double-buffered
             + K * C * 4                          # agg scratch
             + ks * 128 * 4)                      # a_sum scratch (lane-padded)

    def footprint(nt):
        x_dma = 2 * C * nt * x_itemsize           # double-buffered input block
        x_f32 = 2 * C * nt * 4                    # x + xn live f32 values
        x_mxu = C * nt * mxu_itemsize if mxu_itemsize != 4 else 0
        kn = (3 * 4 + mxu_itemsize) * ks * nt     # logits, e, a (+ MXU cast)
        return fixed + x_dma + x_f32 + x_mxu + kn

    cap = N if max_block_n is None else max(1, min(N, max_block_n))
    if cap >= N and footprint(N) <= budget_bytes:
        return N                                  # whole pixel row fits
    if N <= 128:
        return N                                  # short rows must be taken whole
    nt = max(128, (cap // 128) * 128)             # tile must be a multiple of 128 lanes
    while nt > 128 and footprint(nt) > budget_bytes:
        nt -= 128
    return nt


def _netvlad_kernel(x_ref, w_ref, cent_ref, o_ref, agg_ref, asum_ref, *,
                    last_block_cols, mxu_dtype):
    """One (batch element, N tile) grid step.

    x_ref:    (1, C, Nt)  descriptors, channel-major (native NCHW collapse)
    w_ref:    (K, C)      1x1 conv weight (clusters ride the sublane axis)
    cent_ref: (K, C)      cluster centroids
    o_ref:    (1, K, C)   VLAD output block (resident across the N axis)
    agg_ref:  (K, C) f32  scratch accumulator   sum_n a[k,n] * xn[c,n]
    asum_ref: (K, 1) f32  scratch accumulator   sum_n a[k,n]
    """
    n = pl.program_id(1)
    n_last = pl.num_programs(1) - 1

    @pl.when(n == 0)
    def _init():
        agg_ref[...] = jnp.zeros_like(agg_ref)
        asum_ref[...] = jnp.zeros_like(asum_ref)

    # f32 statistics regardless of the streamed dtype (x may arrive as bf16).
    x = x_ref[0].astype(jnp.float32)                           # (C, Nt)
    nt = x.shape[-1]

    needs_mask = last_block_cols != nt                         # trace-time constant
    if needs_mask:
        valid = jnp.where(n == n_last, last_block_cols, nt)
        x = jnp.where(lax.broadcasted_iota(jnp.int32, x.shape, 1) < valid, x, 0.0)

    # F.normalize(x, p=2, dim=C):  x * rsqrt(max(sum_c x^2, eps^2))   (sublane reduce)
    ss = jnp.sum(x * x, axis=0, keepdims=True)                 # (1, Nt)
    xn = x * lax.rsqrt(jnp.maximum(ss, EPS * EPS))             # (C, Nt)

    xn_m = xn.astype(mxu_dtype)
    w_m = w_ref[...].astype(mxu_dtype)

    # 1x1 conv logits: (K, C) @ (C, Nt) -> (K, Nt), f32 accumulate on the MXU.
    logits = jnp.dot(w_m, xn_m, preferred_element_type=jnp.float32)

    # Softmax over clusters (sublane axis), per pixel — no padded clusters.
    m = jnp.max(logits, axis=0, keepdims=True)                 # (1, Nt)
    e = jnp.exp(logits - m)
    a = e * pl.reciprocal(jnp.sum(e, axis=0, keepdims=True))   # (K, Nt) f32

    if needs_mask:
        # Padded pixels get a uniform soft-assignment; zero them so they do
        # not contribute to agg / a_sum.
        a = jnp.where(lax.broadcasted_iota(jnp.int32, a.shape, 1) < valid, a, 0.0)

    # VLAD aggregation contracting the lane (N) axis of both operands directly
    # (trans-B feed, no transposes):  agg[k, c] += sum_n a[k, n] * xn[c, n].
    agg_ref[...] += lax.dot_general(a.astype(mxu_dtype), xn_m,
                                    (((1,), (1,)), ((), ())),
                                    preferred_element_type=jnp.float32)
    asum_ref[...] += jnp.sum(a, axis=1, keepdims=True)         # (K, 1) lane reduce

    @pl.when(n == n_last)
    def _finalize():
        vlad = agg_ref[...] - asum_ref[...] * cent_ref[...].astype(jnp.float32)
        # intra-normalization over C (lane reduce)
        vss = jnp.sum(vlad * vlad, axis=1, keepdims=True)
        vlad = vlad * lax.rsqrt(jnp.maximum(vss, EPS * EPS))
        # global L2 normalization over the flattened (K*C,) vector
        gss = jnp.sum(vlad * vlad, keepdims=True)              # (1, 1)
        o_ref[0] = (vlad * lax.rsqrt(jnp.maximum(gss, EPS * EPS))).astype(o_ref.dtype)


def netvlad_forward(x_nchw, conv_w, centroids, *, mxu_dtype=jnp.float32,
                    max_block_n=None):
    """NetVLAD forward (normalize_input=True, vlad_v2=False).

    x_nchw:    (B, C, H, W)  backbone features (f32; bf16 halves HBM traffic)
    conv_w:    (K, C, 1, 1)  1x1 soft-assignment conv weight (no bias)
    centroids: (K, C)
    returns    (B, K*C)

    mxu_dtype=jnp.bfloat16 runs both MXU matmuls with bf16 operands / f32
    accumulation (recommended on v6e/v7x); all normalizations stay f32.
    """
    B, C, H, W = x_nchw.shape
    K = centroids.shape[0]
    N = H * W

    # Free metadata reshape (contiguous NCHW collapse) — no extra HBM pass.
    x_bcn = x_nchw.reshape(B, C, N)
    # Tiny one-time weight prep: (K, C, 1, 1) -> (K, C).  No K lane-padding:
    # clusters ride the sublane axis in-kernel.
    w_kc = conv_w[:, :, 0, 0]

    vmem_limit, block_budget = _vmem_caps()
    bn = _pick_block_n(C, N, K,
                       jnp.dtype(x_bcn.dtype).itemsize,
                       jnp.dtype(mxu_dtype).itemsize,
                       block_budget, max_block_n)
    grid_n = pl.cdiv(N, bn)
    last_cols = N - (grid_n - 1) * bn

    kernel = functools.partial(_netvlad_kernel,
                               last_block_cols=last_cols, mxu_dtype=mxu_dtype)

    out = pl.pallas_call(
        kernel,
        out_shape=jax.ShapeDtypeStruct((B, K, C), x_nchw.dtype),
        grid_spec=pltpu.PrefetchScalarGridSpec(
            num_scalar_prefetch=0,
            grid=(B, grid_n),                       # reduction (N) axis last
            in_specs=[
                # TODO(synk): add pipeline_mode=pl.Buffered(3) here if profiling
                # shows the x DMA exposed once per-step compute shrinks (bf16).
                pl.BlockSpec((1, C, bn), lambda b, n: (b, 0, n)),
                pl.BlockSpec((K, C), lambda b, n: (0, 0)),
                pl.BlockSpec((K, C), lambda b, n: (0, 0)),
            ],
            out_specs=pl.BlockSpec((1, K, C), lambda b, n: (b, 0, 0)),
            scratch_shapes=[pltpu.VMEM((K, C), jnp.float32),
                            pltpu.VMEM((K, 1), jnp.float32)],
        ),
        compiler_params=pltpu.CompilerParams(
            dimension_semantics=("parallel", "arbitrary"),
            vmem_limit_bytes=vmem_limit,
        ),
    )(x_bcn, w_kc, centroids)

    # Free contiguous collapse; the (K, C) stores were lane-dense for C % 128 == 0.
    return out.reshape(B, K * C)


def netvlad_reference(x_nchw, conv_w, centroids):
    """Plain-JAX reference mirroring the PyTorch forward exactly (f32)."""
    B, C, H, W = x_nchw.shape
    K = centroids.shape[0]
    x = x_nchw.astype(jnp.float32)
    xn = x / jnp.maximum(jnp.linalg.norm(x, axis=1, keepdims=True), EPS)
    w = conv_w[:, :, 0, 0].astype(jnp.float32)
    logits = jnp.einsum('bchw,kc->bkhw', xn, w).reshape(B, K, -1)
    a = jax.nn.softmax(logits, axis=1)                         # (B, K, N)
    xf = xn.reshape(B, C, -1)                                  # (B, C, N)
    vlad = (jnp.einsum('bkn,bcn->bkc', a, xf)
            - jnp.sum(a, axis=-1)[..., None] * centroids[None].astype(jnp.float32))
    vlad = vlad / jnp.maximum(jnp.linalg.norm(vlad, axis=2, keepdims=True), EPS)
    flat = vlad.reshape(B, -1)
    flat = flat / jnp.maximum(jnp.linalg.norm(flat, axis=1, keepdims=True), EPS)
    return flat


if __name__ == "__main__":
    key = jax.random.PRNGKey(0)
    kx, kw, kc, kx2 = jax.random.split(key, 4)

    # Shapes consistent with the module: encoding_dim C = 128, num_clusters K = 8.
    B, C, H, W, K = 4, 128, 8, 8, 8
    x = jax.random.normal(kx, (B, C, H, W), dtype=jnp.float32)
    conv_w = jax.random.uniform(kw, (K, C, 1, 1), dtype=jnp.float32,
                                minval=-0.1, maxval=0.1)
    centroids = jax.random.uniform(kc, (K, C), dtype=jnp.float32)

    # 1) exact-f32 MXU path, single N tile (N = 64).
    out = jax.block_until_ready(netvlad_forward(x, conv_w, centroids))
    ref = netvlad_reference(x, conv_w, centroids)
    assert out.shape == (B, K * C), out.shape
    err = float(jnp.max(jnp.abs(out - ref)))
    assert jnp.allclose(out, ref, atol=5e-5, rtol=5e-5), ("f32 single-tile", err)

    # 2) N-tiled grid with a partial (masked) last tile: N = 144, block_n = 128.
    B2, H2, W2 = 2, 12, 12
    x2 = jax.random.normal(kx2, (B2, C, H2, W2), dtype=jnp.float32)
    out2 = jax.block_until_ready(
        netvlad_forward(x2, conv_w, centroids, max_block_n=128))
    ref2 = netvlad_reference(x2, conv_w, centroids)
    err2 = float(jnp.max(jnp.abs(out2 - ref2)))
    assert jnp.allclose(out2, ref2, atol=5e-5, rtol=5e-5), ("f32 N-tiled", err2)

    # 3) bf16 MXU operands (v6e/v7x fast path); f32 accumulate + f32
    #    softmax/normalizations, so only a small relative error is expected.
    out3 = jax.block_until_ready(
        netvlad_forward(x, conv_w, centroids, mxu_dtype=jnp.bfloat16))
    err3 = float(jnp.max(jnp.abs(out3 - ref)))
    assert jnp.allclose(out3, ref, atol=1e-2, rtol=1e-2), ("bf16 MXU", err3)

    print("KERNEL_OK")
</pallas_src>

<mosaic_0001>
module attributes {stable_mosaic.version = 11 : i64} {
  func.func @_netvlad_kernel(%arg0: i32, %arg1: i32, %arg2: memref<1x128x64xf32, #tpu.memory_space<vmem>>, %arg3: memref<8x128xf32, #tpu.memory_space<vmem>>, %arg4: memref<8x128xf32, #tpu.memory_space<vmem>>, %arg5: memref<1x8x128xf32, #tpu.memory_space<vmem>>, %arg6: memref<8x128xf32, #tpu.memory_space<vmem>>, %arg7: memref<8x1xf32, #tpu.memory_space<vmem>>) attributes {dimension_semantics = [#tpu.dimension_semantics<parallel>, #tpu.dimension_semantics<arbitrary>], iteration_bounds = array<i64: 4, 1>, scalar_prefetch = 0 : i64, scratch_operands = 2 : i64, tpu.core_type = #tpu.core_type<tc>, window_params = [{transform_indices = @transform_0, window_bounds = array<i64: 1, 128, 64>}, {pipeline_mode = #tpu.pipeline_mode<synchronous>, transform_indices = @transform_1, window_bounds = array<i64: 8, 128>}, {pipeline_mode = #tpu.pipeline_mode<synchronous>, transform_indices = @transform_2, window_bounds = array<i64: 8, 128>}, {transform_indices = @transform_3, window_bounds = array<i64: 1, 8, 128>}]} {
    %c0_i32 = arith.constant 0 : i32
    %0 = arith.cmpi eq, %arg1, %c0_i32 : i32
    %1 = arith.extui %0 : i1 to i32
    %c0_i32_0 = arith.constant 0 : i32
    %2 = arith.cmpi ne, %1, %c0_i32_0 : i32
    scf.if %2 {
      %cst_21 = arith.constant 0.000000e+00 : f32
      %37 = vector.broadcast %cst_21 : f32 to vector<8x128xf32>
      %c0_22 = arith.constant 0 : index
      %c0_23 = arith.constant 0 : index
      %38 = vector.load %arg6[%c0_22, %c0_23] : memref<8x128xf32, #tpu.memory_space<vmem>>, vector<8x128xf32>
      tpu.vector_store %arg6[%c0_22, %c0_23], %37 {strides = array<i32>} : memref<8x128xf32, #tpu.memory_space<vmem>>, vector<8x128xf32>,
      %cst_24 = arith.constant 0.000000e+00 : f32
      %39 = vector.broadcast %cst_24 : f32 to vector<8x1xf32>
      %c0_25 = arith.constant 0 : index
      %c0_26 = arith.constant 0 : index
      %40 = vector.load %arg7[%c0_25, %c0_26] : memref<8x1xf32, #tpu.memory_space<vmem>>, vector<8x1xf32>
      tpu.vector_store %arg7[%c0_25, %c0_26], %39 {strides = array<i32>} : memref<8x1xf32, #tpu.memory_space<vmem>>, vector<8x1xf32>,
    } else {
    }
    %c0 = arith.constant 0 : index
    %c0_1 = arith.constant 0 : index
    %c0_2 = arith.constant 0 : index
    %3 = vector.load %arg2[%c0, %c0_1, %c0_2] : memref<1x128x64xf32, #tpu.memory_space<vmem>>, vector<1x128x64xf32>
    %4 = vector.shape_cast %3 : vector<1x128x64xf32> to vector<128x64xf32>
    %5 = arith.mulf %4, %4 : vector<128x64xf32>
    %cst = arith.constant dense<0.000000e+00> : vector<64xf32>
    %6 = vector.multi_reduction <add>, %5, %cst [0] : vector<128x64xf32> to vector<64xf32>
    %7 = vector.shape_cast %6 : vector<64xf32> to vector<1x64xf32>
    %cst_3 = arith.constant 1.000000e-24 : f32
    %8 = vector.broadcast %cst_3 : f32 to vector<1x64xf32>
    %9 = arith.maximumf %7, %8 : vector<1x64xf32>
    %10 = math.rsqrt %9 : vector<1x64xf32>
    %11 = vector.broadcast %10 : vector<1x64xf32> to vector<128x64xf32>
    %12 = arith.mulf %4, %11 : vector<128x64xf32>
    %c0_4 = arith.constant 0 : index
    %c0_5 = arith.constant 0 : index
    %13 = vector.load %arg3[%c0_4, %c0_5] : memref<8x128xf32, #tpu.memory_space<vmem>>, vector<8x128xf32>
    %cst_6 = arith.constant dense<0.000000e+00> : vector<8x64xf32>
    %14 = tpu.matmul %13, %12, %cst_6 {dimension_numbers = #tpu.dot_dimension_numbers<[1], [0], [0], [1], [0, 0, 1, 1], [], []>} : vector<8x128xf32>, vector<128x64xf32>, vector<8x64xf32> -> vector<8x64xf32>
    %cst_7 = arith.constant dense<0xFF800000> : vector<64xf32>
    %15 = vector.multi_reduction <maximumf>, %14, %cst_7 [0] : vector<8x64xf32> to vector<64xf32>
    %16 = vector.shape_cast %15 : vector<64xf32> to vector<1x64xf32>
    %17 = vector.broadcast %16 : vector<1x64xf32> to vector<8x64xf32>
    %18 = arith.subf %14, %17 : vector<8x64xf32>
    %19 = math.exp %18 : vector<8x64xf32>
    %cst_8 = arith.constant dense<0.000000e+00> : vector<64xf32>
    %20 = vector.multi_reduction <add>, %19, %cst_8 [0] : vector<8x64xf32> to vector<64xf32>
    %21 = vector.shape_cast %20 : vector<64xf32> to vector<1x64xf32>
    %22 = tpu.reciprocal %21 : vector<1x64xf32> -> vector<1x64xf32>
    %23 = vector.broadcast %22 : vector<1x64xf32> to vector<8x64xf32>
    %24 = arith.mulf %19, %23 : vector<8x64xf32>
    %c0_9 = arith.constant 0 : index
    %c0_10 = arith.constant 0 : index
    %25 = vector.load %arg6[%c0_9, %c0_10] : memref<8x128xf32, #tpu.memory_space<vmem>>, vector<8x128xf32>
    %cst_11 = arith.constant dense<0.000000e+00> : vector<8x128xf32>
    %26 = tpu.matmul %24, %12, %cst_11 {dimension_numbers = #tpu.dot_dimension_numbers<[1], [1], [0], [0], [0, 0, 1, 0], [], []>} : vector<8x64xf32>, vector<128x64xf32>, vector<8x128xf32> -> vector<8x128xf32>
    %27 = arith.addf %25, %26 : vector<8x128xf32>
    %c0_12 = arith.constant 0 : index
    %c0_13 = arith.constant 0 : index
    %28 = vector.load %arg6[%c0_12, %c0_13] : memref<8x128xf32, #tpu.memory_space<vmem>>, vector<8x128xf32>
    tpu.vector_store %arg6[%c0_12, %c0_13], %27 {strides = array<i32>} : memref<8x128xf32, #tpu.memory_space<vmem>>, vector<8x128xf32>,
    %c0_14 = arith.constant 0 : index
    %c0_15 = arith.constant 0 : index
    %29 = vector.load %arg7[%c0_14, %c0_15] : memref<8x1xf32, #tpu.memory_space<vmem>>, vector<8x1xf32>
    %cst_16 = arith.constant dense<0.000000e+00> : vector<8xf32>
    %30 = vector.multi_reduction <add>, %24, %cst_16 [1] : vector<8x64xf32> to vector<8xf32>
    %31 = vector.shape_cast %30 : vector<8xf32> to vector<8x1xf32>
    %32 = arith.addf %29, %31 : vector<8x1xf32>
    %c0_17 = arith.constant 0 : index
    %c0_18 = arith.constant 0 : index
    %33 = vector.load %arg7[%c0_17, %c0_18] : memref<8x1xf32, #tpu.memory_space<vmem>>, vector<8x1xf32>
    tpu.vector_store %arg7[%c0_17, %c0_18], %32 {strides = array<i32>} : memref<8x1xf32, #tpu.memory_space<vmem>>, vector<8x1xf32>,
    %c0_i32_19 = arith.constant 0 : i32
    %34 = arith.cmpi eq, %arg1, %c0_i32_19 : i32
    %35 = arith.extui %34 : i1 to i32
    %c0_i32_20 = arith.constant 0 : i32
    %36 = arith.cmpi ne, %35, %c0_i32_20 : i32
    scf.if %36 {
      %c0_21 = arith.constant 0 : index
      %c0_22 = arith.constant 0 : index
      %37 = vector.load %arg6[%c0_21, %c0_22] : memref<8x128xf32, #tpu.memory_space<vmem>>, vector<8x128xf32>
      %c0_23 = arith.constant 0 : index
      %c0_24 = arith.constant 0 : index
      %38 = vector.load %arg7[%c0_23, %c0_24] : memref<8x1xf32, #tpu.memory_space<vmem>>, vector<8x1xf32>
      %c0_25 = arith.constant 0 : index
      %c0_26 = arith.constant 0 : index
      %39 = vector.load %arg4[%c0_25, %c0_26] : memref<8x128xf32, #tpu.memory_space<vmem>>, vector<8x128xf32>
      %40 = vector.broadcast %38 : vector<8x1xf32> to vector<8x128xf32>
      %41 = arith.mulf %40, %39 : vector<8x128xf32>
      %42 = arith.subf %37, %41 : vector<8x128xf32>
      %43 = arith.mulf %42, %42 : vector<8x128xf32>
      %cst_27 = arith.constant dense<0.000000e+00> : vector<8xf32>
      %44 = vector.multi_reduction <add>, %43, %cst_27 [1] : vector<8x128xf32> to vector<8xf32>
      %45 = vector.shape_cast %44 : vector<8xf32> to vector<8x1xf32>
      %cst_28 = arith.constant 1.000000e-24 : f32
      %46 = vector.broadcast %cst_28 : f32 to vector<8x1xf32>
      %47 = arith.maximumf %45, %46 : vector<8x1xf32>
      %48 = math.rsqrt %47 : vector<8x1xf32>
      %49 = vector.broadcast %48 : vector<8x1xf32> to vector<8x128xf32>
      %50 = arith.mulf %42, %49 : vector<8x128xf32>
      %51 = arith.mulf %50, %50 : vector<8x128xf32>
      %52 = vector.shape_cast %51 : vector<8x128xf32> to vector<1x8x128xf32>
      %cst_29 = arith.constant dense<0.000000e+00> : vector<1xf32>
      %53 = vector.multi_reduction <add>, %52, %cst_29 [1, 2] : vector<1x8x128xf32> to vector<1xf32>
      %54 = vector.shape_cast %53 : vector<1xf32> to vector<1x1x1xf32>
      %55 = vector.extract %54[0, 0, 0] : f32 from vector<1x1x1xf32>
      %56 = vector.broadcast %55 : f32 to vector<1x1xf32>
      %cst_30 = arith.constant 1.000000e-24 : f32
      %57 = vector.broadcast %cst_30 : f32 to vector<1x1xf32>
      %58 = arith.maximumf %56, %57 : vector<1x1xf32>
      %59 = math.rsqrt %58 : vector<1x1xf32>
      %60 = vector.broadcast %59 : vector<1x1xf32> to vector<8x128xf32>
      %61 = arith.mulf %50, %60 : vector<8x128xf32>
      %c0_31 = arith.constant 0 : index
      %c0_32 = arith.constant 0 : index
      %c0_33 = arith.constant 0 : index
      %62 = vector.load %arg5[%c0_31, %c0_32, %c0_33] : memref<1x8x128xf32, #tpu.memory_space<vmem>>, vector<1x8x128xf32>
      %63 = vector.shape_cast %62 : vector<1x8x128xf32> to vector<8x128xf32>
      %64 = vector.shape_cast %61 : vector<8x128xf32> to vector<1x8x128xf32>
      tpu.vector_store %arg5[%c0_31, %c0_32, %c0_33], %64 {strides = array<i32>} : memref<1x8x128xf32, #tpu.memory_space<vmem>>, vector<1x8x128xf32>,
    } else {
    }
    return
  }
  func.func @transform_0(%arg0: i32, %arg1: i32) -> (i32, i32, i32) {
    %c0_i32 = arith.constant 0 : i32
    %c0_i32_0 = arith.constant 0 : i32
    return %arg0, %c0_i32, %arg1 : i32, i32, i32
  }
  func.func @transform_1(%arg0: i32, %arg1: i32) -> (i32, i32) {
    %c0_i32 = arith.constant 0 : i32
    %c0_i32_0 = arith.constant 0 : i32
    %c0_i32_1 = arith.constant 0 : i32
    return %c0_i32, %c0_i32_0 : i32, i32
  }
  func.func @transform_2(%arg0: i32, %arg1: i32) -> (i32, i32) {
    %c0_i32 = arith.constant 0 : i32
    %c0_i32_0 = arith.constant 0 : i32
    %c0_i32_1 = arith.constant 0 : i32
    return %c0_i32, %c0_i32_0 : i32, i32
  }
  func.func @transform_3(%arg0: i32, %arg1: i32) -> (i32, i32, i32) {
    %c0_i32 = arith.constant 0 : i32
    %c0_i32_0 = arith.constant 0 : i32
    %c0_i32_1 = arith.constant 0 : i32
    return %arg0, %c0_i32, %c0_i32_0 : i32, i32, i32
  }
}

</mosaic_0001>

<llo_original>
// kernel: tpu_custom_call.1
$region0: #{tpu_custom_call.1}
  #allocation0 [shape = 'u32[]', space=smem, size = 0x4, offset = 0x4, fixed_abs, tag = 'smem constant byte address 0x4 - core index']
  #allocation1 [shape = 'u32[72,128]{1,0:T(1,128)}', space=vmem, size = 0x9000, scoped, tag = 'internal scratch']
  #allocation2 [shape = 'f32[8,128]{1,0:T(8,128)}', space=vmem, size = 0x1000, scoped, tag = 'scratch operand']
  #allocation3 [shape = 'f32[8,1]{1,0:T(8,128)}', space=vmem, size = 0x1000, scoped, tag = 'scratch operand']
  %s0 = inlined_call_operand.vmem [shape: f32[4,128,64], index: 0, kind: input, shape index: {}]
  %s1 = inlined_call_operand.vmem [shape: f32[8,128], index: 1, kind: input, shape index: {}]
  %s2 = inlined_call_operand.vmem [shape: f32[8,128], index: 2, kind: input, shape index: {}]
  %s3 = inlined_call_operand.hbm [shape: f32[4,8,128], index: 3, kind: output, shape index: {}]
  %s4 = sld [smem:[#allocation0]]
  $region53: #{tpu_custom_call.1} parent=0
    _
  %s6 = ssub.s32 1, %s4
  %s7 = scalar_select 0, %s6, %s4
  $region1: #{tpu_custom_call.1} parent=0
    #allocation4 [shape = 'u8[8192]{0}', space=vmem, size = 0x2000, scoped, tag = 'output window, operand 0']
    #allocation5 [shape = 's32[2]{0}', space=sflag, size = 0x8, scoped, tag = 'scoped memory for tpu_custom_call.1']
    %8 = vsyncpa [#allocation5], 0
    %s9 = scalar_lea.sflag [#allocation5], 1
    %10 = vsyncpa %s9, 0
    loop: start=0, step=1, limit=6
    $region2: #{tpu_custom_call.1} parent=1 // loop_pre_header
      _
    $region3: #{tpu_custom_call.1} parent=1 // loop_header
      %s12 = sphi 0, %s16
      %p13 = scmp.ge.s32.totalorder %s12, 6
      %s19 = sphi 0, %s31
      %s20 = sphi 0, %s27
      %s21 = sphi 0, %s19
      %s22 = sphi 0, %s20
      %s23 = sphi 0, %s21
      %s24 = sphi 0, %s22
      %s36 = sphi 0, %s38
      %s39 = sphi 0, %s36
      %s40 = sphi 0, %s39
      %s56 = sphi 0, %s40
      %s60 = sphi 0, %s60
      %s62 = sphi 0, %s60
      %s63 = sphi 0, %s62
      %s77 = sphi 0, %s63
      %s81 = sphi 0, %s81
      %s83 = sphi 0, %s81
      %s84 = sphi 0, %s83
      %s98 = sphi 0, %s84
      %s104 = sphi 0, %s106
      %s107 = sphi 0, %s104
      %s108 = sphi 0, %s107
      %s124 = sphi 0, %s108
    $region4: #{tpu_custom_call.1} parent=1 // loop_header_branch
      %15 = sbr.rel (%p13) target = $region8
    $region5: #{tpu_custom_call.1} parent=1 // loop_body
      %s17 = ssub.s32 %s12, 1
      %s18 = ssub.s32 %s12, 2
      %s25 = sadd.s32 1, %s20
      %p26 = scmp.ge.s32.totalorder %s25, 1
      %s27 = scalar_select %p26, 0, %s25
      %s28 = sadd.s32 1, %s19
      %s29 = scalar_select %p26, %s28, %s19
      %p30 = scmp.ge.s32.totalorder %s29, 4
      %s31 = scalar_select %p30, 0, %s29
      %s32 = ssub.s32 %s19, %s31
      %s33 = ssub.s32 %s20, %s27
      %s34 = sor.u32 %s32, %s33
      %p35 = scmp.eq.s32.totalorder %s34, 0
      %s37 = sadd.s32 %s36, 1
      %s38 = scalar_select %p35, %s36, %s37
      %p41 = pneg %p35
      %p42 = scmp.eq.s32.totalorder %s12, 3
      %p43 = por %p41, %p42
      %p44 = scmp.ne.s32.totalorder %s36, %s39
      %p45 = scmp.eq.s32.totalorder %s12, 0
      %p46 = por %p44, %p45
      %p47 = scmp.ne.s32.totalorder %s36, %s39
      %p48 = scmp.eq.s32.totalorder %s17, 3
      %p49 = por %p47, %p48
      %p50 = scmp.ne.s32.totalorder %s39, %s40
      %p51 = scmp.eq.s32.totalorder %s17, 0
      %p52 = por %p50, %p51
      %p53 = scmp.ne.s32.totalorder %s39, %s40
      %p54 = scmp.eq.s32.totalorder %s18, 3
      %p55 = por %p53, %p54
      %p57 = scmp.ne.s32.totalorder %s40, %s56
      %p58 = scmp.eq.s32.totalorder %s18, 0
      %p59 = por %p57, %p58
      %s61 = sadd.s32 %s60, 1
      %p64 = scmp.eq.s32.totalorder %s12, 3
      %p65 = scmp.ne.s32.totalorder %s60, %s62
      %p66 = scmp.eq.s32.totalorder %s12, 0
      %p67 = por %p65, %p66
      %p68 = scmp.ne.s32.totalorder %s60, %s62
      %p69 = scmp.eq.s32.totalorder %s17, 3
      %p70 = por %p68, %p69
      %p71 = scmp.ne.s32.totalorder %s62, %s63
      %p72 = scmp.eq.s32.totalorder %s17, 0
      %p73 = por %p71, %p72
      %p74 = scmp.ne.s32.totalorder %s62, %s63
      %p75 = scmp.eq.s32.totalorder %s18, 3
      %p76 = por %p74, %p75
      %p78 = scmp.ne.s32.totalorder %s63, %s77
      %p79 = scmp.eq.s32.totalorder %s18, 0
      %p80 = por %p78, %p79
      %s82 = sadd.s32 %s81, 1
      %p85 = scmp.eq.s32.totalorder %s12, 3
      %p86 = scmp.ne.s32.totalorder %s81, %s83
      %p87 = scmp.eq.s32.totalorder %s12, 0
      %p88 = por %p86, %p87
      %p89 = scmp.ne.s32.totalorder %s81, %s83
      %p90 = scmp.eq.s32.totalorder %s17, 3
      %p91 = por %p89, %p90
      %p92 = scmp.ne.s32.totalorder %s83, %s84
      %p93 = scmp.eq.s32.totalorder %s17, 0
      %p94 = por %p92, %p93
      %p95 = scmp.ne.s32.totalorder %s83, %s84
      %p96 = scmp.eq.s32.totalorder %s18, 3
      %p97 = por %p95, %p96
      %p99 = scmp.ne.s32.totalorder %s84, %s98
      %p100 = scmp.eq.s32.totalorder %s18, 0
      %p101 = por %p99, %p100
      %s102 = ssub.s32 %s19, %s31
      %p103 = scmp.eq.s32.totalorder %s102, 0
      %s105 = sadd.s32 %s104, 1
      %s106 = scalar_select %p103, %s104, %s105
      %p109 = pneg %p103
      %p110 = scmp.eq.s32.totalorder %s12, 3
      %p111 = por %p109, %p110
      %p112 = scmp.ne.s32.totalorder %s104, %s107
      %p113 = scmp.eq.s32.totalorder %s12, 0
      %p114 = por %p112, %p113
      %p115 = scmp.ne.s32.totalorder %s104, %s107
      %p116 = scmp.eq.s32.totalorder %s17, 3
      %p117 = por %p115, %p116
      %p118 = scmp.ne.s32.totalorder %s107, %s108
      %p119 = scmp.eq.s32.totalorder %s17, 0
      %p120 = por %p118, %p119
      %p121 = scmp.ne.s32.totalorder %s107, %s108
      %p122 = scmp.eq.s32.totalorder %s18, 3
      %p123 = por %p121, %p122
      %p125 = scmp.ne.s32.totalorder %s108, %s124
      %p126 = scmp.eq.s32.totalorder %s18, 0
      %p127 = por %p125, %p126
      %p128 = scmp.le.s32.totalorder 1, %s12
      %p129 = scmp.lt.s32.totalorder %s12, 5
      %p130 = pnand %p128, %p129
      %p131 = pneg %p130
      // Predicated region
      $region9: #{tpu_custom_call.1} parent=5 // pred_check
        _
      $region10: #{tpu_custom_call.1} parent=5 // pred_check_branch
        %133 = sbr.rel (%p130) target = $region12
      $region11: #{tpu_custom_call.1} parent=5 // pred_region
        %s134 = ssub.s32 %s12, 1
        // Predicated region
        $region13: #{tpu_custom_call.1} parent=11 // pred_check
          %p135 = pneg %p73
        $region14: #{tpu_custom_call.1} parent=11 // pred_check_branch
          %137 = sbr.rel (%p135) target = $region16
        $region15: #{tpu_custom_call.1} parent=11 // pred_region
          _
        $region16: #{tpu_custom_call.1} parent=11 // pred_fallthru
          _
        // Predicated region
        $region17: #{tpu_custom_call.1} parent=11 // pred_check
          %p138 = pneg %p94
        $region18: #{tpu_custom_call.1} parent=11 // pred_check_branch
          %140 = sbr.rel (%p138) target = $region20
        $region19: #{tpu_custom_call.1} parent=11 // pred_region
          _
        $region20: #{tpu_custom_call.1} parent=11 // pred_fallthru
          _
      $region12: #{tpu_custom_call.1} parent=5 // pred_fallthru
        _
      %p141 = scmp.lt.s32.totalorder %s12, 4
      // Predicated region
      $region21: #{tpu_custom_call.1} parent=5 // pred_check
        %p142 = pneg %p141
      $region22: #{tpu_custom_call.1} parent=5 // pred_check_branch
        %144 = sbr.rel (%p142) target = $region24
      $region23: #{tpu_custom_call.1} parent=5 // pred_region
        // Predicated region
        $region25: #{tpu_custom_call.1} parent=23 // pred_check
          %p145 = pneg %p46
        $region26: #{tpu_custom_call.1} parent=23 // pred_check_branch
          %147 = sbr.rel (%p145) target = $region28
        $region27: #{tpu_custom_call.1} parent=23 // pred_region
          %p148 = scmp.lt.s32.totalorder %s19, 3
          %s149 = scalar_select %p148, %s19, 3
          %p150 = scmp.lt.s32.totalorder %s20, 0
          %s151 = scalar_select %p150, %s20, 0
          %s152 = smul.addr %s149, 16
          %s153 = sadd.s32 %s151, %s152
          %s154 = smul.addr %s153, 8
          %s155 = scalar_lea.vmem %s0, %s154
        $region28: #{tpu_custom_call.1} parent=23 // pred_fallthru
          _
      $region24: #{tpu_custom_call.1} parent=5 // pred_fallthru
        _
      %p156 = scmp.le.s32.totalorder 1, %s12
      %p157 = scmp.lt.s32.totalorder %s12, 5
      %p158 = pnand %p156, %p157
      %p159 = pneg %p158
      // Predicated region
      $region29: #{tpu_custom_call.1} parent=5 // pred_check
        _
      $region30: #{tpu_custom_call.1} parent=5 // pred_check_branch
        %161 = sbr.rel (%p158) target = $region32
      $region31: #{tpu_custom_call.1} parent=5 // pred_region
        %s162 = ssub.s32 %s12, 1
        %p163 = scmp.lt.s32.totalorder %s21, 3
        %s164 = scalar_select %p163, %s21, 3
        %p165 = scmp.lt.s32.totalorder %s22, 0
        %s166 = scalar_select %p165, %s22, 0
        %s167 = smul.addr %s164, 16
        %s168 = sadd.s32 %s166, %s167
        %s169 = smul.addr %s168, 8
        %s170 = scalar_lea.vmem %s0, %s169
        %p171 = pneg %p52
        %p172 = pneg %p49
        %p173 = pneg %p73
        %p174 = pneg %p70
        %p175 = pneg %p94
        %p176 = pneg %p91
        %p177 = pneg %p120
        %p178 = pneg %p117
        %s179 = sand.u32 %s107, 1
        %s180 = scalar_lea.sflag [#allocation5], %s179
        %s181 = sand.u32 %s107, 1
        %s182 = smul.addr %s181, 8
        %s183 = scalar_lea.vmem [#allocation4], %s182
        %p184 = scmp.lt.s32.totalorder %s21, 3
        %s185 = scalar_select %p184, %s21, 3
        %p186 = scmp.lt.s32.totalorder %s22, 0
        %s187 = scalar_select %p186, %s22, 0
        %s188 = smul.addr %s185, 16
        %s189 = sadd.s32 %s187, %s188
        %s190 = smul.addr %s189, 8
        %s191 = scalar_lea.vmem %s0, %s190
        %p192 = scmp.eq.s32.totalorder %s22, 0
        // Predicated region
        $region33: #{tpu_custom_call.1} parent=31 // pred_check
          %p193 = pneg %p192
        $region34: #{tpu_custom_call.1} parent=31 // pred_check_branch
          %195 = sbr.rel (%p193) target = $region36
        $region35: #{tpu_custom_call.1} parent=31 // pred_region
          %196 = vst [vmem:[#allocation2] sm:$0xff] 0.0
          %vm197 = vcmask 7168
          %198 = vst.msk [vmem:[#allocation3] sm:$0xff] %vm197, 0.0
        $region36: #{tpu_custom_call.1} parent=31 // pred_fallthru
          _
        %v199 = vld [vmem:[%s191] sm:$0xff]
        %v200 = vld [vmem:[%s191 + $0x8] sm:$0xff]
        %v201 = vld [vmem:[%s191 + $0x10] sm:$0xff]
        %v202 = vld [vmem:[%s191 + $0x18] sm:$0xff]
        %v203 = vld [vmem:[%s191 + $0x20] sm:$0xff]
        %v204 = vld [vmem:[%s191 + $0x28] sm:$0xff]
        %v205 = vld [vmem:[%s191 + $0x30] sm:$0xff]
        %v206 = vld [vmem:[%s191 + $0x38] sm:$0xff]
        %v207 = vld [vmem:[%s191 + $0x40] sm:$0xff]
        %v208 = vld [vmem:[%s191 + $0x48] sm:$0xff]
        %v209 = vld [vmem:[%s191 + $0x50] sm:$0xff]
        %v210 = vld [vmem:[%s191 + $0x58] sm:$0xff]
        %v211 = vld [vmem:[%s191 + $0x60] sm:$0xff]
        %v212 = vld [vmem:[%s191 + $0x68] sm:$0xff]
        %v213 = vld [vmem:[%s191 + $0x70] sm:$0xff]
        %v214 = vld [vmem:[%s191 + $0x78] sm:$0xff]
        %v215 = vmul.f32 %v199, %v199
        %v216 = vmul.f32 %v200, %v200
        %v217 = vmul.f32 %v201, %v201
        %v218 = vmul.f32 %v202, %v202
        %v219 = vmul.f32 %v203, %v203
        %v220 = vmul.f32 %v204, %v204
        %v221 = vmul.f32 %v205, %v205
        %v222 = vmul.f32 %v206, %v206
        %v223 = vmul.f32 %v207, %v207
        %v224 = vmul.f32 %v208, %v208
        %v225 = vmul.f32 %v209, %v209
        %v226 = vmul.f32 %v210, %v210
        %v227 = vmul.f32 %v211, %v211
        %v228 = vmul.f32 %v212, %v212
        %v229 = vmul.f32 %v213, %v213
        %v230 = vmul.f32 %v214, %v214
        %vm231 = vcmask 523264
        %v232 = vsel %vm231, %v215, 0.0
        %v233 = vsel %vm231, %v216, 0.0
        %v234 = vadd.f32 %v232, %v233
        %v235 = vsel %vm231, %v217, 0.0
        %v236 = vadd.f32 %v234, %v235
        %v237 = vsel %vm231, %v218, 0.0
        %v238 = vadd.f32 %v236, %v237
        %v239 = vsel %vm231, %v219, 0.0
        %v240 = vadd.f32 %v238, %v239
        %v241 = vsel %vm231, %v220, 0.0
        %v242 = vadd.f32 %v240, %v241
        %v243 = vsel %vm231, %v221, 0.0
        %v244 = vadd.f32 %v242, %v243
        %v245 = vsel %vm231, %v222, 0.0
        %v246 = vadd.f32 %v244, %v245
        %v247 = vsel %vm231, %v223, 0.0
        %v248 = vadd.f32 %v246, %v247
        %v249 = vsel %vm231, %v224, 0.0
        %v250 = vadd.f32 %v248, %v249
        %v251 = vsel %vm231, %v225, 0.0
        %v252 = vadd.f32 %v250, %v251
        %v253 = vsel %vm231, %v226, 0.0
        %v254 = vadd.f32 %v252, %v253
        %v255 = vsel %vm231, %v227, 0.0
        %v256 = vadd.f32 %v254, %v255
        %v257 = vsel %vm231, %v228, 0.0
        %v258 = vadd.f32 %v256, %v257
        %v259 = vsel %vm231, %v229, 0.0
        %v260 = vadd.f32 %v258, %v259
        %v261 = vsel %vm231, %v230, 0.0
        %v262 = vadd.f32 %v260, %v261
        %v263 = vrot.slane %v262, 4
        %v264 = vadd.f32 %v262, %v263
        %v265 = vrot.slane %v264, 2
        %v266 = vadd.f32 %v264, %v265
        %v267 = vrot.slane %v266, 1
        %v268 = vadd.f32 %v266, %v267
        %v269 = vmax.f32 %v268, 1e-24
        %v270 = vrsqrt.pop %v269
        %v271 = vmul.f32 %v270, %v269
        %v272 = vmul.f32 %v271, %v270
        %v273 = vmul.f32 0.5, %v272
        %v274 = vsub.f32 1.5, %v273
        %v275 = vmul.f32 %v270, %v274
        %vm276 = vweird.f32 %v269
        %vm277 = vweird.f32 %v270
        %vm278 = vmor %vm276, %vm277
        %v279 = vsel %vm278, %v270, %v275
        %v280 = vmul.f32 %v199, %v279
        %v281 = vmul.f32 %v200, %v279
        %v282 = vmul.f32 %v201, %v279
        %v283 = vmul.f32 %v202, %v279
        %v284 = vmul.f32 %v203, %v279
        %v285 = vmul.f32 %v204, %v279
        %v286 = vmul.f32 %v205, %v279
        %v287 = vmul.f32 %v206, %v279
        %v288 = vmul.f32 %v207, %v279
        %v289 = vmul.f32 %v208, %v279
        %v290 = vmul.f32 %v209, %v279
        %v291 = vmul.f32 %v210, %v279
        %v292 = vmul.f32 %v211, %v279
        %v293 = vmul.f32 %v212, %v279
        %v294 = vmul.f32 %v213, %v279
        %v295 = vmul.f32 %v214, %v279
        %v296 = vld [vmem:[%s1] sm:$0xff]
        %297 = vmatpush.msra.mxu0 %v295
        %298 = vmatpush.msra.mxu0 %v294
        %299 = vmatpush.msra.mxu0 %v293
        %300 = vmatpush.msra.mxu0 %v292
        %301 = vmatpush.msra.mxu0 %v291
        %302 = vmatpush.msra.mxu0 %v290
        %303 = vmatpush.msra.mxu0 %v289
        %304 = vmatpush.msra.mxu0 %v288
        %305 = vmatpush.msra.mxu0 %v287
        %306 = vmatpush.msra.mxu0 %v286
        %307 = vmatpush.msra.mxu0 %v285
        %308 = vmatpush.msra.mxu0 %v284
        %309 = vmatpush.msra.mxu0 %v283
        %310 = vmatpush.msra.mxu0 %v282
        %311 = vmatpush.msra.mxu0 %v281
        %312 = vmatpush.msra.mxu0 %v280
        %313 = vmatmul.f32.gmra.mxu0 %v296
        %v314 = vpop.f32.mrf.mxu0
        %v315 = vadd.f32 0.0, %v314
        %316 = vdwg.mxu0
        %v317 = vsel %vm231, %v315, -inf
        %v318 = vrot.slane %v317, 4
        %v319 = vmax.f32 %v317, %v318
        %v320 = vrot.slane %v319, 2
        %v321 = vmax.f32 %v319, %v320
        %v322 = vrot.slane %v321, 1
        %v323 = vmax.f32 %v321, %v322
        %v324 = vsub.f32 %v315, %v323
        %v325 = vmul.f32 %v324, 1.442695
        %v326 = vpow.pop %v325
        %v327 = vsel %vm231, %v326, 0.0
        %v328 = vrot.slane %v327, 4
        %v329 = vadd.f32 %v327, %v328
        %v330 = vrot.slane %v329, 2
        %v331 = vadd.f32 %v329, %v330
        %v332 = vrot.slane %v331, 1
        %v333 = vadd.f32 %v331, %v332
        %v334 = vrcp.pop %v333
        %v335 = vmul.f32 %v333, %v334
        %v336 = vsub.f32 1.0, %v335
        %v337 = vmul.f32 %v334, %v336
        %v338 = vadd.f32 %v334, %v337
        %vm339 = vweird.f32 %v333
        %vm340 = vweird.f32 %v334
        %vm341 = vmor %vm339, %vm340
        %v342 = vsel %vm341, %v334, %v338
        %v343 = vand.u32 2147483647, %v333
        %vm344 = vcmp.eq.f32.partialorder %v343, 8.507059e+37
        %v345 = vand.u32 %v333, 2147483648
        %v346 = vor.u32 1.1754944e-38, %v345
        %v347 = vsel %vm344, %v346, %v342
        %v348 = vmul.f32 %v326, %v347
        %v349 = vld [vmem:[#allocation2] sm:$0xff]
        %v351 = vsel %vm231, %v348, 0
        %v354 = vsel %vm231, %v280, 0
        %v357 = vsel %vm231, %v281, 0
        %v360 = vsel %vm231, %v282, 0
        %v363 = vsel %vm231, %v283, 0
        %v366 = vsel %vm231, %v284, 0
        %v369 = vsel %vm231, %v285, 0
        %v372 = vsel %vm231, %v286, 0
        %v375 = vsel %vm231, %v287, 0
        %v378 = vsel %vm231, %v288, 0
        %v381 = vsel %vm231, %v289, 0
        %v384 = vsel %vm231, %v290, 0
        %v387 = vsel %vm231, %v291, 0
        %v390 = vsel %vm231, %v292, 0
        %v393 = vsel %vm231, %v293, 0
        %v396 = vsel %vm231, %v294, 0
        %v399 = vsel %vm231, %v295, 0
        %401 = vmatpush.xpose.msra.mxu0 %v399
        %402 = vmatpush.xpose.msra.mxu0 %v396
        %403 = vmatpush.xpose.msra.mxu0 %v393
        %404 = vmatpush.xpose.msra.mxu0 %v390
        %405 = vmatpush.xpose.msra.mxu0 %v387
        %406 = vmatpush.xpose.msra.mxu0 %v384
        %407 = vmatpush.xpose.msra.mxu0 %v381
        %408 = vmatpush.xpose.msra.mxu0 %v378
        %409 = vmatpush.xpose.msra.mxu0 %v375
        %410 = vmatpush.xpose.msra.mxu0 %v372
        %411 = vmatpush.xpose.msra.mxu0 %v369
        %412 = vmatpush.xpose.msra.mxu0 %v366
        %413 = vmatpush.xpose.msra.mxu0 %v363
        %414 = vmatpush.xpose.msra.mxu0 %v360
        %415 = vmatpush.xpose.msra.mxu0 %v357
        %416 = vmatpush.xpose.msra.mxu0 %v354
        %417 = vmatmul.f32.gmra.mxu0 %v351
        %v418 = vpop.f32.mrf.mxu0
        %v419 = vadd.f32 0.0, %v418
        %420 = vdwg.mxu0
        %v421 = vadd.f32 %v349, %v419
        %422 = vst [vmem:[#allocation2] sm:$0xff] %v421
        %v423 = vld [vmem:[#allocation3] sm:$0xff]
        %v424 = vsel %vm231, %v348, 0.0
        %425 = vadd.xlane.f32.xlu0 %v424
        %v426 = vpop.xlane.xlu0 %425
        %v427 = vadd.f32 %v423, %v426
        %vm428 = vcmask 7168
        %429 = vst.msk [vmem:[#allocation3] sm:$0xff] %vm428, %v427
        // Predicated region
        $region37: #{tpu_custom_call.1} parent=31 // pred_check
          %p430 = pneg %p192
        $region38: #{tpu_custom_call.1} parent=31 // pred_check_branch
          %432 = sbr.rel (%p430) target = $region40
        $region39: #{tpu_custom_call.1} parent=31 // pred_region
          %v433 = vld [vmem:[#allocation2] sm:$0xff]
          %v434 = vld [vmem:[#allocation3] sm:$0xff]
          %v435 = vld [vmem:[%s2] sm:$0xff]
          %437 = vset.pattern.permute.xlu0 0
          %438 = vperm.xlu0 %437, %v434
          %v439 = vpop.permute.xlu0 %438
          %v441 = vmul.f32 %v439, %v435
          %v442 = vsub.f32 %v433, %v441
          %v443 = vmul.f32 %v442, %v442
          %444 = vadd.xlane.f32.xlu0 %v443
          %v445 = vpop.xlane.xlu0 %444
          %v446 = vmax.f32 %v445, 1e-24
          %v447 = vrsqrt.pop %v446
          %v448 = vmul.f32 %v447, %v446
          %v449 = vmul.f32 %v448, %v447
          %v450 = vmul.f32 0.5, %v449
          %v451 = vsub.f32 1.5, %v450
          %v452 = vmul.f32 %v447, %v451
          %vm453 = vweird.f32 %v446
          %vm454 = vweird.f32 %v447
          %vm455 = vmor %vm453, %vm454
          %v456 = vsel %vm455, %v447, %v452
          %v457 = vmul.f32 %v442, %v456
          %v458 = vmul.f32 %v457, %v457
          %459 = vadd.xlane.f32.xlu0 %v458
          %v460 = vpop.xlane.xlu0 %459
          %v461 = vrot.slane %v460, 4
          %v462 = vadd.f32 %v460, %v461
          %v463 = vrot.slane %v462, 2
          %v464 = vadd.f32 %v462, %v463
          %v465 = vrot.slane %v464, 1
          %v466 = vadd.f32 %v464, %v465
          %s467 = vtos %v466
          %v468 = vstv %s467
          %v469 = vmax.f32 %v468, 1e-24
          %v470 = vrsqrt.pop %v469
          %v471 = vmul.f32 %v470, %v469
          %v472 = vmul.f32 %v471, %v470
          %v473 = vmul.f32 0.5, %v472
          %v474 = vsub.f32 1.5, %v473
          %v475 = vmul.f32 %v470, %v474
          %vm476 = vweird.f32 %v469
          %vm477 = vweird.f32 %v470
          %vm478 = vmor %vm476, %vm477
          %v479 = vsel %vm478, %v470, %v475
          %v480 = vmul.f32 %v457, %v479
          %481 = vst [vmem:[%s183] sm:$0xff] %v480
        $region40: #{tpu_custom_call.1} parent=31 // pred_fallthru
          _
        %s482 = sand.u32 %s107, 1
        %s483 = scalar_lea.sflag [#allocation5], %s482
        %s484 = sand.u32 %s107, 1
        %s485 = smul.addr %s484, 8
        %s486 = scalar_lea.vmem [#allocation4], %s485
        // Predicated region
        $region41: #{tpu_custom_call.1} parent=31 // pred_check
          %p487 = pneg %p117
        $region42: #{tpu_custom_call.1} parent=31 // pred_check_branch
          %489 = sbr.rel (%p487) target = $region44
        $region43: #{tpu_custom_call.1} parent=31 // pred_region
          %491 = vsyncadd %s483, 0
          %s492 = smul.addr %s21, 8
          %s493 = scalar_lea.hbm %s3, %s492
          %s495 = sshll.u32 %s486, 4
          %s496 = int_to_ptr.vmem [resolvable:$true] %s495
          %s497 = sshll.u32 %s493, 4
          %s498 = int_to_ptr.hbm [resolvable:$true] %s497
          %500 = dma.vmem_to_hbm [thread:$0]  %s496, 128, %s498, %s483
        $region44: #{tpu_custom_call.1} parent=31 // pred_fallthru
          _
      $region32: #{tpu_custom_call.1} parent=5 // pred_fallthru
        _
      %p501 = scmp.le.s32.totalorder 2, %s12
      // Predicated region
      $region45: #{tpu_custom_call.1} parent=5 // pred_check
        %p502 = pneg %p501
      $region46: #{tpu_custom_call.1} parent=5 // pred_check_branch
        %504 = sbr.rel (%p502) target = $region48
      $region47: #{tpu_custom_call.1} parent=5 // pred_region
        %s505 = ssub.s32 %s12, 2
        // Predicated region
        $region49: #{tpu_custom_call.1} parent=47 // pred_check
          %p506 = pneg %p123
        $region50: #{tpu_custom_call.1} parent=47 // pred_check_branch
          %508 = sbr.rel (%p506) target = $region52
        $region51: #{tpu_custom_call.1} parent=47 // pred_region
          %s509 = sand.u32 %s108, 1
          %s510 = scalar_lea.sflag [#allocation5], %s509
          %s511 = sand.u32 %s108, 1
          %s512 = smul.addr %s511, 8
          %s513 = scalar_lea.vmem [#allocation4], %s512
          %515 = dma.done %s510, 128
        $region52: #{tpu_custom_call.1} parent=47 // pred_fallthru
          _
      $region48: #{tpu_custom_call.1} parent=5 // pred_fallthru
        _
    $region6: #{tpu_custom_call.1} parent=1 // loop_footer
      %s16 = sadd.s32 1, %s12
    $region7: #{tpu_custom_call.1} parent=1 // loop_footer_branch
      %11 = sbr.rel target = $region3
    $region8: #{tpu_custom_call.1} parent=1 // loop_exit
      _
    %516 = vsyncpa [#allocation5], 1
    %s517 = scalar_lea.sflag [#allocation5], 1
    %518 = vsyncpa %s517, 1

</llo_original>
